<compile_context>
chip_gen: v7x
topology: tpu7x:2x2x1
jax: 0.10.0
libtpu: 0.0.40
codegen_flags: <defaults>
</compile_context>

<pallas_src>
import functools

import jax
import jax.numpy as jnp
from jax.experimental import pallas as pl
from jax.experimental.pallas import tpu as pltpu


def _round_up(n, m):
    return ((n + m - 1) // m) * m


# ----------------------------------------------------------------------------
# Pallas kernel: fused mean-pool + (Linear -> LayerNorm -> ReLU)* -> Linear
# ----------------------------------------------------------------------------
def _mlp_kernel(num_hidden, inv_cols, eps, mxu_dtype,
                x_ref, w_ref, v_ref, wo_ref, vo_ref, out_ref):
    # x_ref : [bm, num_cols, C]   encoder output tile (bf16 on the perf path)
    # w_ref : [H, C, C]           stacked hidden Linear weights
    # v_ref : [H, 8, C]           packed per-layer vectors: row0=b, row1=gamma, row2=beta
    # wo_ref: [C, out_p]          final Linear weight (out padded to 128 lanes if needed)
    # vo_ref: [8, out_p]          row0 = final bias
    # out_ref:[bm, out_p]

    # mean-pool over the column dim with a widening sum (no f32 temp of x).
    h = jnp.sum(x_ref[...], axis=1, dtype=jnp.float32) * inv_cols      # [bm, C]

    def layer(h, w, vl):
        b, gamma, beta = vl[0:1, :], vl[1:2, :], vl[2:3, :]
        # Linear on the MXU, f32 accumulation.
        h = jnp.dot(h.astype(mxu_dtype), w.astype(mxu_dtype),
                    preferred_element_type=jnp.float32) + b
        # LayerNorm(C), eps=1e-5: two-pass mean/var in f32 (robust to large means).
        mu = jnp.mean(h, axis=-1, keepdims=True)
        d = h - mu
        var = jnp.mean(d * d, axis=-1, keepdims=True)
        h = d * jax.lax.rsqrt(var + eps)
        h = h * gamma + beta
        # ReLU; Dropout(p=0.2) is identity in eval mode.
        # TODO(synk): training-mode dropout would need pltpu.prng_* masking.
        return jnp.maximum(h, 0.0)

    if num_hidden <= 4:
        # shallow backbone: unroll (each iteration carries an MXU op, no spill risk)
        for l in range(num_hidden):
            h = layer(h, w_ref[l], v_ref[l])
    else:
        # deep backbone: fori_loop keeps vreg live ranges flat
        h = jax.lax.fori_loop(
            0, num_hidden, lambda l, hh: layer(hh, w_ref[l], v_ref[l]), h)

    out = jnp.dot(h.astype(mxu_dtype), wo_ref[...].astype(mxu_dtype),
                  preferred_element_type=jnp.float32) + vo_ref[0:1, :]
    out_ref[...] = out.astype(out_ref.dtype)


def mlp_forward(x, hidden_params, w_out, b_out, *,
                mxu_dtype=jnp.bfloat16, bm=None):
    """x: [B, num_cols, C] encoder output.  Returns [B, out_channels] (f32)."""
    B, num_cols, C = x.shape
    out_channels = w_out.shape[1]
    num_hidden = len(hidden_params)
    assert num_hidden >= 1, "num_layers must be >= 2"
    eps = 1e-5

    # bf16 perf path: stream x narrow and feed the MXU bf16; LN/accum stay f32.
    if mxu_dtype == jnp.bfloat16 and x.dtype != jnp.bfloat16:
        # TODO(synk): ideally the upstream encoder emits bf16 directly so this
        # cast pass over [B, num_cols, C] disappears.
        x = x.astype(jnp.bfloat16)

    # lane-dense output: pad out_channels to 128 lanes only when needed.
    out_p = out_channels if out_channels % 128 == 0 else _round_up(out_channels, 128)

    # --- pack parameters: stacked weights + one [8, C] vector tile per layer ---
    w_stack = jnp.stack([w for (w, _, _, _) in hidden_params], axis=0)   # [H,C,C]
    v_stack = jnp.stack(
        [jnp.zeros((8, C), jnp.float32).at[0].set(b).at[1].set(g).at[2].set(be)
         for (_, b, g, be) in hidden_params], axis=0)                    # [H,8,C]
    wo = w_out.astype(jnp.float32)
    if out_p != out_channels:
        wo = jnp.pad(wo, ((0, 0), (0, out_p - out_channels)))
    vo = jnp.zeros((8, out_p), jnp.float32).at[0, :out_channels].set(
        b_out.astype(jnp.float32))
    if mxu_dtype != jnp.float32:
        w_stack = w_stack.astype(mxu_dtype)      # halves weight DMA bytes
        wo = wo.astype(mxu_dtype)

    # --- per-generation VMEM budget (v5e/v6e: 128 MiB, v7x: 64 MiB) ---
    try:
        vmem_cap = int(pltpu.get_tpu_info().vmem_capacity_bytes)
    except Exception:
        vmem_cap = 128 * 1024 * 1024
    budget = int(0.7 * vmem_cap)
    x_bufs = 3 if vmem_cap >= 96 * 1024 * 1024 else 2   # deeper x pipeline on v5e/v6e

    params_bytes = (w_stack.size * w_stack.dtype.itemsize
                    + v_stack.size * v_stack.dtype.itemsize
                    + wo.size * wo.dtype.itemsize
                    + vo.size * vo.dtype.itemsize)
    x_row = num_cols * C * x.dtype.itemsize
    per_row = x_bufs * x_row + 2 * out_p * 4

    # --- batch tile selection (budget-driven, generation-aware) ---
    if bm is None:
        avail = max(8 * per_row, budget - params_bytes - (4 << 20))
        bm = max(8, min(1024, avail // per_row))
    bm = min(bm, max(256, -(-B // 2)))     # >=2 grid steps for large B (v7x: 2 TCs)
    if bm >= B:
        bm = B                              # one step covers the whole batch
    elif bm >= 256:
        bm = (bm // 256) * 256              # full MXU row passes (v6e/v7x)
    elif bm >= 128:
        bm = (bm // 128) * 128
    else:
        bm = max(8, (bm // 8) * 8)          # aligned masked-tail stores
    grid = (pl.cdiv(B, bm),)                # partial tail block handled by Pallas

    # VMEM limit: actual need (+ Mosaic scratch headroom; worst case: params
    # double-buffered if the Buffered(1) request falls back).
    vmem_need = (x_bufs * bm * x_row + 2 * bm * out_p * 4
                 + 2 * params_bytes + (4 << 20))
    vmem_limit = int(min(int(0.8 * vmem_cap), max(32 << 20, vmem_need)))

    kernel = functools.partial(_mlp_kernel, num_hidden, 1.0 / num_cols, eps, mxu_dtype)
    out_spec = pl.BlockSpec((bm, out_p), lambda i: (i, 0))
    cparams = pltpu.CompilerParams(dimension_semantics=("parallel",),
                                   vmem_limit_bytes=vmem_limit)

    def _call(with_pipeline_modes):
        if with_pipeline_modes:
            x_spec = pl.BlockSpec((bm, num_cols, C), lambda i: (i, 0, 0),
                                  pipeline_mode=pl.Buffered(x_bufs))

            def const_spec(shape):
                nd = len(shape)
                return pl.BlockSpec(shape, lambda i, _n=nd: (0,) * _n,
                                    pipeline_mode=pl.Buffered(1))
        else:
            x_spec = pl.BlockSpec((bm, num_cols, C), lambda i: (i, 0, 0))

            def const_spec(shape):
                nd = len(shape)
                return pl.BlockSpec(shape, lambda i, _n=nd: (0,) * _n)

        in_specs = [x_spec,
                    const_spec((num_hidden, C, C)),
                    const_spec((num_hidden, 8, C)),
                    const_spec((C, out_p)),
                    const_spec((8, out_p))]
        return pl.pallas_call(
            kernel,
            out_shape=jax.ShapeDtypeStruct((B, out_p), jnp.float32),
            grid_spec=pltpu.PrefetchScalarGridSpec(
                num_scalar_prefetch=0, grid=grid,
                in_specs=in_specs, out_specs=out_spec),
            compiler_params=cparams,
        )(x, w_stack, v_stack, wo, vo)

    try:
        out = _call(True)      # single-buffered params + deep x pipeline
    except Exception:
        # TODO(synk): pipeline_mode=pl.Buffered unsupported on this jax build;
        # fall back to default double-buffering (correctness identical).
        out = _call(False)

    if out_p != out_channels:
        out = out[:, :out_channels]
    return out


# ----------------------------------------------------------------------------
# Encoder glue (plain JAX): simplified StypeWiseFeatureEncoder
#   - categorical columns: EmbeddingEncoder  -> per-column embedding lookup
#   - numerical columns:   LinearEncoder     -> (x - mean)/std * w_col + b_col
# TODO(synk): full torch_frame col_stats handling (NaN imputation, etc.) omitted.
# ----------------------------------------------------------------------------
def encode_features(x_cat, x_num, emb_tables, num_w, num_b, num_mean, num_std):
    cat_enc = jnp.stack(
        [jnp.take(emb_tables[j], x_cat[:, j], axis=0)
         for j in range(x_cat.shape[1])], axis=1)            # [B, N_cat, C]
    x_norm = (x_num - num_mean[None, :]) / num_std[None, :]
    num_enc = x_norm[:, :, None] * num_w[None, :, :] + num_b[None, :, :]
    return jnp.concatenate([cat_enc, num_enc], axis=1)       # [B, N_cat+N_num, C]


# ----------------------------------------------------------------------------
# Pure-JAX reference of the MLP hot path (for the correctness check)
# ----------------------------------------------------------------------------
def mlp_reference(x, hidden_params, w_out, b_out, eps=1e-5):
    h = jnp.mean(x.astype(jnp.float32), axis=1)
    for (w, b, g, be) in hidden_params:
        h = h @ w + b
        mu = jnp.mean(h, axis=-1, keepdims=True)
        var = jnp.mean((h - mu) ** 2, axis=-1, keepdims=True)
        h = (h - mu) / jnp.sqrt(var + eps)
        h = h * g + be
        h = jnp.maximum(h, 0.0)
    return h @ w_out + b_out


if __name__ == "__main__":
    # Small shapes: batch=16, channels=32, out_channels=4, num_layers=3
    # columns: 3 categorical (10 categories each) + 3 numerical -> num_cols=6
    B, C, OUT, NUM_LAYERS = 16, 32, 4, 3
    N_CAT, N_NUM, N_CATEGORIES = 3, 3, 10

    key = jax.random.PRNGKey(0)
    keys = jax.random.split(key, 16)

    # --- deterministic parameter init (shapes follow the module __init__) ---
    emb_tables = jax.random.normal(keys[0], (N_CAT, N_CATEGORIES, C), jnp.float32) * 0.1
    num_w = jax.random.normal(keys[1], (N_NUM, C), jnp.float32) * 0.1
    num_b = jax.random.normal(keys[2], (N_NUM, C), jnp.float32) * 0.1
    num_mean = jnp.zeros((N_NUM,), jnp.float32)
    num_std = jnp.ones((N_NUM,), jnp.float32)

    # MLP backbone: (num_layers - 1) x [Linear(C,C), LayerNorm(C), ReLU, Dropout]
    hidden_params = []
    bound = 1.0 / jnp.sqrt(jnp.float32(C))
    for i in range(NUM_LAYERS - 1):
        w = jax.random.uniform(keys[3 + 2 * i], (C, C), jnp.float32, -bound, bound)
        b = jax.random.uniform(keys[4 + 2 * i], (C,), jnp.float32, -bound, bound)
        gamma = jnp.ones((C,), jnp.float32)   # LayerNorm.reset_parameters()
        beta = jnp.zeros((C,), jnp.float32)
        hidden_params.append((w, b, gamma, beta))
    # final Linear(C, OUT)
    w_out = jax.random.uniform(keys[10], (C, OUT), jnp.float32, -bound, bound)
    b_out = jax.random.uniform(keys[11], (OUT,), jnp.float32, -bound, bound)

    # --- deterministic example inputs (stand-in for TensorFrame feat_dict) ---
    x_cat = jax.random.randint(keys[12], (B, N_CAT), 0, N_CATEGORIES, jnp.int32)
    x_num = jax.random.normal(keys[13], (B, N_NUM), jnp.float32)

    # encoder (glue, plain JAX): x: [B, N_CAT + N_NUM, C]
    x = encode_features(x_cat, x_num, emb_tables, num_w, num_b, num_mean, num_std)

    ref = mlp_reference(x, hidden_params, w_out, b_out)

    # --- default bf16 perf path (loose check: bf16 MXU + bf16 x stream) ---
    out = mlp_forward(x, hidden_params, w_out, b_out)
    out = jax.block_until_ready(out)
    assert out.shape == (B, OUT)
    assert jnp.allclose(out, ref, atol=1e-1, rtol=1e-1)

    # --- f32 path (tight check) ---
    out32 = mlp_forward(x, hidden_params, w_out, b_out, mxu_dtype=jnp.float32)
    out32 = jax.block_until_ready(out32)
    assert out32.shape == (B, OUT)
    assert jnp.allclose(out32, ref, atol=1e-3, rtol=1e-3)

    # --- partial-tail-block path: B=20 not divisible by bm=8 (masked writeback) ---
    x_tail = jnp.concatenate([x, x[:4]], axis=0)              # [20, 6, 32]
    ref_tail = mlp_reference(x_tail, hidden_params, w_out, b_out)
    out_tail = mlp_forward(x_tail, hidden_params, w_out, b_out, bm=8)
    out_tail = jax.block_until_ready(out_tail)
    assert out_tail.shape == (20, OUT)
    assert jnp.allclose(out_tail, ref_tail, atol=1e-1, rtol=1e-1)

    print("KERNEL_OK")
</pallas_src>

<mosaic_0001>
module attributes {stable_mosaic.version = 11 : i64} {
  func.func @_mlp_kernel(%arg0: i32, %arg1: memref<16x6x32xbf16, #tpu.memory_space<vmem>>, %arg2: memref<2x32x32xbf16, #tpu.memory_space<vmem>>, %arg3: memref<2x8x32xf32, #tpu.memory_space<vmem>>, %arg4: memref<32x128xbf16, #tpu.memory_space<vmem>>, %arg5: memref<8x128xf32, #tpu.memory_space<vmem>>, %arg6: memref<16x128xf32, #tpu.memory_space<vmem>>) attributes {dimension_semantics = [#tpu.dimension_semantics<parallel>], iteration_bounds = array<i64: 1>, scalar_prefetch = 0 : i64, scratch_operands = 0 : i64, tpu.core_type = #tpu.core_type<tc>, window_params = [{transform_indices = @transform_0, window_bounds = array<i64: 16, 6, 32>}, {pipeline_mode = #tpu.pipeline_mode<synchronous>, transform_indices = @transform_1, window_bounds = array<i64: 2, 32, 32>}, {pipeline_mode = #tpu.pipeline_mode<synchronous>, transform_indices = @transform_2, window_bounds = array<i64: 2, 8, 32>}, {pipeline_mode = #tpu.pipeline_mode<synchronous>, transform_indices = @transform_3, window_bounds = array<i64: 32, 128>}, {pipeline_mode = #tpu.pipeline_mode<synchronous>, transform_indices = @transform_4, window_bounds = array<i64: 8, 128>}, {transform_indices = @transform_5, window_bounds = array<i64: 16, 128>}]} {
    %c0 = arith.constant 0 : index
    %c0_0 = arith.constant 0 : index
    %c0_1 = arith.constant 0 : index
    %0 = vector.load %arg1[%c0, %c0_0, %c0_1] : memref<16x6x32xbf16, #tpu.memory_space<vmem>>, vector<16x6x32xbf16>
    %1 = arith.extf %0 : vector<16x6x32xbf16> to vector<16x6x32xf32>
    %cst = arith.constant dense<0.000000e+00> : vector<16x32xf32>
    %2 = vector.multi_reduction <add>, %1, %cst [1] : vector<16x6x32xf32> to vector<16x32xf32>
    %cst_2 = arith.constant 0.166666672 : f32
    %3 = vector.broadcast %cst_2 : f32 to vector<16x32xf32>
    %4 = arith.mulf %2, %3 : vector<16x32xf32>
    %c0_3 = arith.constant 0 : index
    %c0_4 = arith.constant 0 : index
    %c0_5 = arith.constant 0 : index
    %5 = vector.load %arg2[%c0_3, %c0_4, %c0_5] : memref<2x32x32xbf16, #tpu.memory_space<vmem>>, vector<1x32x32xbf16>
    %6 = vector.shape_cast %5 : vector<1x32x32xbf16> to vector<32x32xbf16>
    %c0_6 = arith.constant 0 : index
    %c0_7 = arith.constant 0 : index
    %c0_8 = arith.constant 0 : index
    %7 = vector.load %arg3[%c0_6, %c0_7, %c0_8] : memref<2x8x32xf32, #tpu.memory_space<vmem>>, vector<1x8x32xf32>
    %8 = vector.shape_cast %7 : vector<1x8x32xf32> to vector<8x32xf32>
    %9 = vector.extract_strided_slice %8 {offsets = [0, 0], sizes = [1, 32], strides = [1, 1]} : vector<8x32xf32> to vector<1x32xf32>
    %10 = vector.extract_strided_slice %8 {offsets = [1, 0], sizes = [1, 32], strides = [1, 1]} : vector<8x32xf32> to vector<1x32xf32>
    %11 = vector.extract_strided_slice %8 {offsets = [2, 0], sizes = [1, 32], strides = [1, 1]} : vector<8x32xf32> to vector<1x32xf32>
    %12 = arith.truncf %4 : vector<16x32xf32> to vector<16x32xbf16>
    %cst_9 = arith.constant dense<0.000000e+00> : vector<16x32xf32>
    %13 = tpu.matmul %12, %6, %cst_9 {dimension_numbers = #tpu.dot_dimension_numbers<[1], [0], [0], [1], [0, 0, 1, 1], [], []>} : vector<16x32xbf16>, vector<32x32xbf16>, vector<16x32xf32> -> vector<16x32xf32>
    %14 = vector.broadcast %9 : vector<1x32xf32> to vector<16x32xf32>
    %15 = arith.addf %13, %14 : vector<16x32xf32>
    %cst_10 = arith.constant dense<0.000000e+00> : vector<16xf32>
    %16 = vector.multi_reduction <add>, %15, %cst_10 [1] : vector<16x32xf32> to vector<16xf32>
    %17 = vector.shape_cast %16 : vector<16xf32> to vector<16x1xf32>
    %cst_11 = arith.constant 3.200000e+01 : f32
    %18 = vector.broadcast %cst_11 : f32 to vector<16x1xf32>
    %19 = arith.divf %17, %18 : vector<16x1xf32>
    %20 = vector.broadcast %19 : vector<16x1xf32> to vector<16x32xf32>
    %21 = arith.subf %15, %20 : vector<16x32xf32>
    %22 = arith.mulf %21, %21 : vector<16x32xf32>
    %cst_12 = arith.constant dense<0.000000e+00> : vector<16xf32>
    %23 = vector.multi_reduction <add>, %22, %cst_12 [1] : vector<16x32xf32> to vector<16xf32>
    %24 = vector.shape_cast %23 : vector<16xf32> to vector<16x1xf32>
    %cst_13 = arith.constant 3.200000e+01 : f32
    %25 = vector.broadcast %cst_13 : f32 to vector<16x1xf32>
    %26 = arith.divf %24, %25 : vector<16x1xf32>
    %cst_14 = arith.constant 9.99999974E-6 : f32
    %27 = vector.broadcast %cst_14 : f32 to vector<16x1xf32>
    %28 = arith.addf %26, %27 : vector<16x1xf32>
    %29 = math.rsqrt %28 : vector<16x1xf32>
    %30 = vector.broadcast %29 : vector<16x1xf32> to vector<16x32xf32>
    %31 = arith.mulf %21, %30 : vector<16x32xf32>
    %32 = vector.broadcast %10 : vector<1x32xf32> to vector<16x32xf32>
    %33 = arith.mulf %31, %32 : vector<16x32xf32>
    %34 = vector.broadcast %11 : vector<1x32xf32> to vector<16x32xf32>
    %35 = arith.addf %33, %34 : vector<16x32xf32>
    %cst_15 = arith.constant 0.000000e+00 : f32
    %36 = vector.broadcast %cst_15 : f32 to vector<16x32xf32>
    %37 = arith.maximumf %35, %36 : vector<16x32xf32>
    %c1 = arith.constant 1 : index
    %c0_16 = arith.constant 0 : index
    %c0_17 = arith.constant 0 : index
    %38 = vector.load %arg2[%c1, %c0_16, %c0_17] : memref<2x32x32xbf16, #tpu.memory_space<vmem>>, vector<1x32x32xbf16>
    %39 = vector.shape_cast %38 : vector<1x32x32xbf16> to vector<32x32xbf16>
    %c1_18 = arith.constant 1 : index
    %c0_19 = arith.constant 0 : index
    %c0_20 = arith.constant 0 : index
    %40 = vector.load %arg3[%c1_18, %c0_19, %c0_20] : memref<2x8x32xf32, #tpu.memory_space<vmem>>, vector<1x8x32xf32>
    %41 = vector.shape_cast %40 : vector<1x8x32xf32> to vector<8x32xf32>
    %42 = vector.extract_strided_slice %41 {offsets = [0, 0], sizes = [1, 32], strides = [1, 1]} : vector<8x32xf32> to vector<1x32xf32>
    %43 = vector.extract_strided_slice %41 {offsets = [1, 0], sizes = [1, 32], strides = [1, 1]} : vector<8x32xf32> to vector<1x32xf32>
    %44 = vector.extract_strided_slice %41 {offsets = [2, 0], sizes = [1, 32], strides = [1, 1]} : vector<8x32xf32> to vector<1x32xf32>
    %45 = arith.truncf %37 : vector<16x32xf32> to vector<16x32xbf16>
    %cst_21 = arith.constant dense<0.000000e+00> : vector<16x32xf32>
    %46 = tpu.matmul %45, %39, %cst_21 {dimension_numbers = #tpu.dot_dimension_numbers<[1], [0], [0], [1], [0, 0, 1, 1], [], []>} : vector<16x32xbf16>, vector<32x32xbf16>, vector<16x32xf32> -> vector<16x32xf32>
    %47 = vector.broadcast %42 : vector<1x32xf32> to vector<16x32xf32>
    %48 = arith.addf %46, %47 : vector<16x32xf32>
    %cst_22 = arith.constant dense<0.000000e+00> : vector<16xf32>
    %49 = vector.multi_reduction <add>, %48, %cst_22 [1] : vector<16x32xf32> to vector<16xf32>
    %50 = vector.shape_cast %49 : vector<16xf32> to vector<16x1xf32>
    %cst_23 = arith.constant 3.200000e+01 : f32
    %51 = vector.broadcast %cst_23 : f32 to vector<16x1xf32>
    %52 = arith.divf %50, %51 : vector<16x1xf32>
    %53 = vector.broadcast %52 : vector<16x1xf32> to vector<16x32xf32>
    %54 = arith.subf %48, %53 : vector<16x32xf32>
    %55 = arith.mulf %54, %54 : vector<16x32xf32>
    %cst_24 = arith.constant dense<0.000000e+00> : vector<16xf32>
    %56 = vector.multi_reduction <add>, %55, %cst_24 [1] : vector<16x32xf32> to vector<16xf32>
    %57 = vector.shape_cast %56 : vector<16xf32> to vector<16x1xf32>
    %cst_25 = arith.constant 3.200000e+01 : f32
    %58 = vector.broadcast %cst_25 : f32 to vector<16x1xf32>
    %59 = arith.divf %57, %58 : vector<16x1xf32>
    %cst_26 = arith.constant 9.99999974E-6 : f32
    %60 = vector.broadcast %cst_26 : f32 to vector<16x1xf32>
    %61 = arith.addf %59, %60 : vector<16x1xf32>
    %62 = math.rsqrt %61 : vector<16x1xf32>
    %63 = vector.broadcast %62 : vector<16x1xf32> to vector<16x32xf32>
    %64 = arith.mulf %54, %63 : vector<16x32xf32>
    %65 = vector.broadcast %43 : vector<1x32xf32> to vector<16x32xf32>
    %66 = arith.mulf %64, %65 : vector<16x32xf32>
    %67 = vector.broadcast %44 : vector<1x32xf32> to vector<16x32xf32>
    %68 = arith.addf %66, %67 : vector<16x32xf32>
    %cst_27 = arith.constant 0.000000e+00 : f32
    %69 = vector.broadcast %cst_27 : f32 to vector<16x32xf32>
    %70 = arith.maximumf %68, %69 : vector<16x32xf32>
    %71 = arith.truncf %70 : vector<16x32xf32> to vector<16x32xbf16>
    %c0_28 = arith.constant 0 : index
    %c0_29 = arith.constant 0 : index
    %72 = vector.load %arg4[%c0_28, %c0_29] : memref<32x128xbf16, #tpu.memory_space<vmem>>, vector<32x128xbf16>
    %cst_30 = arith.constant dense<0.000000e+00> : vector<16x128xf32>
    %73 = tpu.matmul %71, %72, %cst_30 {dimension_numbers = #tpu.dot_dimension_numbers<[1], [0], [0], [1], [0, 0, 1, 1], [], []>} : vector<16x32xbf16>, vector<32x128xbf16>, vector<16x128xf32> -> vector<16x128xf32>
    %c0_31 = arith.constant 0 : index
    %c0_32 = arith.constant 0 : index
    %74 = vector.load %arg5[%c0_31, %c0_32] : memref<8x128xf32, #tpu.memory_space<vmem>>, vector<1x128xf32>
    %75 = vector.broadcast %74 : vector<1x128xf32> to vector<16x128xf32>
    %76 = arith.addf %73, %75 : vector<16x128xf32>
    %c0_33 = arith.constant 0 : index
    %c0_34 = arith.constant 0 : index
    %77 = vector.load %arg6[%c0_33, %c0_34] : memref<16x128xf32, #tpu.memory_space<vmem>>, vector<16x128xf32>
    tpu.vector_store %arg6[%c0_33, %c0_34], %76 {strides = array<i32>} : memref<16x128xf32, #tpu.memory_space<vmem>>, vector<16x128xf32>,
    return
  }
  func.func @transform_0(%arg0: i32) -> (i32, i32, i32) {
    %c0_i32 = arith.constant 0 : i32
    %c0_i32_0 = arith.constant 0 : i32
    %c0_i32_1 = arith.constant 0 : i32
    return %arg0, %c0_i32, %c0_i32_0 : i32, i32, i32
  }
  func.func @transform_1(%arg0: i32) -> (i32, i32, i32) {
    %c0_i32 = arith.constant 0 : i32
    %c0_i32_0 = arith.constant 0 : i32
    %c0_i32_1 = arith.constant 0 : i32
    %c0_i32_2 = arith.constant 0 : i32
    return %c0_i32, %c0_i32_0, %c0_i32_1 : i32, i32, i32
  }
  func.func @transform_2(%arg0: i32) -> (i32, i32, i32) {
    %c0_i32 = arith.constant 0 : i32
    %c0_i32_0 = arith.constant 0 : i32
    %c0_i32_1 = arith.constant 0 : i32
    %c0_i32_2 = arith.constant 0 : i32
    return %c0_i32, %c0_i32_0, %c0_i32_1 : i32, i32, i32
  }
  func.func @transform_3(%arg0: i32) -> (i32, i32) {
    %c0_i32 = arith.constant 0 : i32
    %c0_i32_0 = arith.constant 0 : i32
    %c0_i32_1 = arith.constant 0 : i32
    return %c0_i32, %c0_i32_0 : i32, i32
  }
  func.func @transform_4(%arg0: i32) -> (i32, i32) {
    %c0_i32 = arith.constant 0 : i32
    %c0_i32_0 = arith.constant 0 : i32
    %c0_i32_1 = arith.constant 0 : i32
    return %c0_i32, %c0_i32_0 : i32, i32
  }
  func.func @transform_5(%arg0: i32) -> (i32, i32) {
    %c0_i32 = arith.constant 0 : i32
    %c0_i32_0 = arith.constant 0 : i32
    return %arg0, %c0_i32 : i32, i32
  }
}

</mosaic_0001>

<llo_original>
// kernel: tpu_custom_call.1
$region0: #{tpu_custom_call.1}
  #allocation0 [shape = 'u32[]', space=smem, size = 0x4, offset = 0x4, fixed_abs, tag = 'smem constant byte address 0x4 - core index']
  #allocation1 [shape = 'u32[144,128]{1,0:T(1,128)}', space=vmem, size = 0x12000, scoped, tag = 'internal scratch']
  %s0 = inlined_call_operand.vmem [shape: bf16[16,6,32], index: 0, kind: input, shape index: {}]
  %s1 = inlined_call_operand.vmem [shape: bf16[2,32,32], index: 1, kind: input, shape index: {}]
  %s2 = inlined_call_operand.vmem [shape: f32[2,8,32], index: 2, kind: input, shape index: {}]
  %s3 = inlined_call_operand.vmem [shape: bf16[32,128], index: 3, kind: input, shape index: {}]
  %s4 = inlined_call_operand.vmem [shape: f32[8,128], index: 4, kind: input, shape index: {}]
  %s5 = inlined_call_operand.hbm [shape: f32[16,128], index: 5, kind: output, shape index: {}]
  %s6 = sld [smem:[#allocation0]]
  $region30: #{tpu_custom_call.1} parent=0
    _
  %s8 = ssub.s32 1, %s6
  %s9 = scalar_select 0, %s8, %s6
  $region1: #{tpu_custom_call.1} parent=0
    #allocation2 [shape = 'u8[8192]{0}', space=vmem, size = 0x2000, scoped, tag = 'output window, operand 0, single buffered']
    #allocation3 [shape = 's32[1]{0}', space=sflag, size = 0x4, scoped, tag = 'scoped memory for tpu_custom_call.1']
    %10 = vsyncpa [#allocation3], 0
    // Predicated region
    $region2: #{tpu_custom_call.1} parent=1 // pred_check
      _
    $region3: #{tpu_custom_call.1} parent=1 // pred_check_branch
      %12 = sbr.rel (0) target = $region5
    $region4: #{tpu_custom_call.1} parent=1 // pred_region
      _
    $region5: #{tpu_custom_call.1} parent=1 // pred_fallthru
      _
    // Predicated region
    $region6: #{tpu_custom_call.1} parent=1 // pred_check
      _
    $region7: #{tpu_custom_call.1} parent=1 // pred_check_branch
      %14 = sbr.rel (0) target = $region9
    $region8: #{tpu_custom_call.1} parent=1 // pred_region
      _
    $region9: #{tpu_custom_call.1} parent=1 // pred_fallthru
      _
    // Predicated region
    $region10: #{tpu_custom_call.1} parent=1 // pred_check
      _
    $region11: #{tpu_custom_call.1} parent=1 // pred_check_branch
      %16 = sbr.rel (0) target = $region13
    $region12: #{tpu_custom_call.1} parent=1 // pred_region
      _
    $region13: #{tpu_custom_call.1} parent=1 // pred_fallthru
      _
    // Predicated region
    $region14: #{tpu_custom_call.1} parent=1 // pred_check
      _
    $region15: #{tpu_custom_call.1} parent=1 // pred_check_branch
      %18 = sbr.rel (0) target = $region17
    $region16: #{tpu_custom_call.1} parent=1 // pred_region
      _
    $region17: #{tpu_custom_call.1} parent=1 // pred_fallthru
      _
    // Predicated region
    $region18: #{tpu_custom_call.1} parent=1 // pred_check
      _
    $region19: #{tpu_custom_call.1} parent=1 // pred_check_branch
      %20 = sbr.rel (0) target = $region21
    $region20: #{tpu_custom_call.1} parent=1 // pred_region
      _
    $region21: #{tpu_custom_call.1} parent=1 // pred_fallthru
      _
    %v22 = vld [vmem:[%s0] sm:$0x7]
    %v23 = vld [vmem:[%s0 + $0x4] sm:$0x7]
    %v24 = vld [vmem:[%s0 + $0x8] sm:$0x7]
    %v25 = vld [vmem:[%s0 + $0xc] sm:$0x7]
    %v26 = vld [vmem:[%s0 + $0x10] sm:$0x7]
    %v27 = vld [vmem:[%s0 + $0x14] sm:$0x7]
    %v28 = vld [vmem:[%s0 + $0x18] sm:$0x7]
    %v29 = vld [vmem:[%s0 + $0x1c] sm:$0x7]
    %v30 = vld [vmem:[%s0 + $0x20] sm:$0x7]
    %v31 = vld [vmem:[%s0 + $0x24] sm:$0x7]
    %v32 = vld [vmem:[%s0 + $0x28] sm:$0x7]
    %v33 = vld [vmem:[%s0 + $0x2c] sm:$0x7]
    %v34 = vld [vmem:[%s0 + $0x30] sm:$0x7]
    %v35 = vld [vmem:[%s0 + $0x34] sm:$0x7]
    %v36 = vld [vmem:[%s0 + $0x38] sm:$0x7]
    %v37 = vld [vmem:[%s0 + $0x3c] sm:$0x7]
    %v38 = vunpack.c.l.bf16 %v22
    %v39 = vunpack.c.l.bf16 %v23
    %v40 = vunpack.c.l.bf16 %v24
    %v41 = vunpack.c.l.bf16 %v25
    %v42 = vunpack.c.l.bf16 %v26
    %v43 = vunpack.c.l.bf16 %v27
    %v44 = vunpack.c.l.bf16 %v28
    %v45 = vunpack.c.l.bf16 %v29
    %v46 = vunpack.c.l.bf16 %v30
    %v47 = vunpack.c.l.bf16 %v31
    %v48 = vunpack.c.l.bf16 %v32
    %v49 = vunpack.c.l.bf16 %v33
    %v50 = vunpack.c.l.bf16 %v34
    %v51 = vunpack.c.l.bf16 %v35
    %v52 = vunpack.c.l.bf16 %v36
    %v53 = vunpack.c.l.bf16 %v37
    %vm54 = vcmask 259072
    %v55 = vsel %vm54, %v38, 0.0
    %v56 = vrot.slane %v55, 4
    %v57 = vadd.f32 %v55, %v56
    %v58 = vrot.slane %v57, 2
    %v59 = vadd.f32 %v57, %v58
    %v60 = vrot.slane %v59, 1
    %v61 = vadd.f32 %v59, %v60
    %v62 = vsel %vm54, %v39, 0.0
    %v63 = vrot.slane %v62, 4
    %v64 = vadd.f32 %v62, %v63
    %v65 = vrot.slane %v64, 2
    %v66 = vadd.f32 %v64, %v65
    %v67 = vrot.slane %v66, 1
    %v68 = vadd.f32 %v66, %v67
    %v69 = vsel %vm54, %v40, 0.0
    %v70 = vrot.slane %v69, 4
    %v71 = vadd.f32 %v69, %v70
    %v72 = vrot.slane %v71, 2
    %v73 = vadd.f32 %v71, %v72
    %v74 = vrot.slane %v73, 1
    %v75 = vadd.f32 %v73, %v74
    %v76 = vsel %vm54, %v41, 0.0
    %v77 = vrot.slane %v76, 4
    %v78 = vadd.f32 %v76, %v77
    %v79 = vrot.slane %v78, 2
    %v80 = vadd.f32 %v78, %v79
    %v81 = vrot.slane %v80, 1
    %v82 = vadd.f32 %v80, %v81
    %v83 = vsel %vm54, %v42, 0.0
    %v84 = vrot.slane %v83, 4
    %v85 = vadd.f32 %v83, %v84
    %v86 = vrot.slane %v85, 2
    %v87 = vadd.f32 %v85, %v86
    %v88 = vrot.slane %v87, 1
    %v89 = vadd.f32 %v87, %v88
    %v90 = vsel %vm54, %v43, 0.0
    %v91 = vrot.slane %v90, 4
    %v92 = vadd.f32 %v90, %v91
    %v93 = vrot.slane %v92, 2
    %v94 = vadd.f32 %v92, %v93
    %v95 = vrot.slane %v94, 1
    %v96 = vadd.f32 %v94, %v95
    %v97 = vsel %vm54, %v44, 0.0
    %v98 = vrot.slane %v97, 4
    %v99 = vadd.f32 %v97, %v98
    %v100 = vrot.slane %v99, 2
    %v101 = vadd.f32 %v99, %v100
    %v102 = vrot.slane %v101, 1
    %v103 = vadd.f32 %v101, %v102
    %v104 = vsel %vm54, %v45, 0.0
    %v105 = vrot.slane %v104, 4
    %v106 = vadd.f32 %v104, %v105
    %v107 = vrot.slane %v106, 2
    %v108 = vadd.f32 %v106, %v107
    %v109 = vrot.slane %v108, 1
    %v110 = vadd.f32 %v108, %v109
    %v111 = vsel %vm54, %v46, 0.0
    %v112 = vrot.slane %v111, 4
    %v113 = vadd.f32 %v111, %v112
    %v114 = vrot.slane %v113, 2
    %v115 = vadd.f32 %v113, %v114
    %v116 = vrot.slane %v115, 1
    %v117 = vadd.f32 %v115, %v116
    %v118 = vsel %vm54, %v47, 0.0
    %v119 = vrot.slane %v118, 4
    %v120 = vadd.f32 %v118, %v119
    %v121 = vrot.slane %v120, 2
    %v122 = vadd.f32 %v120, %v121
    %v123 = vrot.slane %v122, 1
    %v124 = vadd.f32 %v122, %v123
    %v125 = vsel %vm54, %v48, 0.0
    %v126 = vrot.slane %v125, 4
    %v127 = vadd.f32 %v125, %v126
    %v128 = vrot.slane %v127, 2
    %v129 = vadd.f32 %v127, %v128
    %v130 = vrot.slane %v129, 1
    %v131 = vadd.f32 %v129, %v130
    %v132 = vsel %vm54, %v49, 0.0
    %v133 = vrot.slane %v132, 4
    %v134 = vadd.f32 %v132, %v133
    %v135 = vrot.slane %v134, 2
    %v136 = vadd.f32 %v134, %v135
    %v137 = vrot.slane %v136, 1
    %v138 = vadd.f32 %v136, %v137
    %v139 = vsel %vm54, %v50, 0.0
    %v140 = vrot.slane %v139, 4
    %v141 = vadd.f32 %v139, %v140
    %v142 = vrot.slane %v141, 2
    %v143 = vadd.f32 %v141, %v142
    %v144 = vrot.slane %v143, 1
    %v145 = vadd.f32 %v143, %v144
    %v146 = vsel %vm54, %v51, 0.0
    %v147 = vrot.slane %v146, 4
    %v148 = vadd.f32 %v146, %v147
    %v149 = vrot.slane %v148, 2
    %v150 = vadd.f32 %v148, %v149
    %v151 = vrot.slane %v150, 1
    %v152 = vadd.f32 %v150, %v151
    %v153 = vsel %vm54, %v52, 0.0
    %v154 = vrot.slane %v153, 4
    %v155 = vadd.f32 %v153, %v154
    %v156 = vrot.slane %v155, 2
    %v157 = vadd.f32 %v155, %v156
    %v158 = vrot.slane %v157, 1
    %v159 = vadd.f32 %v157, %v158
    %v160 = vsel %vm54, %v53, 0.0
    %v161 = vrot.slane %v160, 4
    %v162 = vadd.f32 %v160, %v161
    %v163 = vrot.slane %v162, 2
    %v164 = vadd.f32 %v162, %v163
    %v165 = vrot.slane %v164, 1
    %v166 = vadd.f32 %v164, %v165
    %v167 = vmul.f32 %v61, 0.16666667
    %v168 = vmul.f32 %v68, 0.16666667
    %v169 = vmul.f32 %v75, 0.16666667
    %v170 = vmul.f32 %v82, 0.16666667
    %v171 = vmul.f32 %v89, 0.16666667
    %v172 = vmul.f32 %v96, 0.16666667
    %v173 = vmul.f32 %v103, 0.16666667
    %v174 = vmul.f32 %v110, 0.16666667
    %v175 = vmul.f32 %v117, 0.16666667
    %v176 = vmul.f32 %v124, 0.16666667
    %v177 = vmul.f32 %v131, 0.16666667
    %v178 = vmul.f32 %v138, 0.16666667
    %v179 = vmul.f32 %v145, 0.16666667
    %v180 = vmul.f32 %v152, 0.16666667
    %v181 = vmul.f32 %v159, 0.16666667
    %v182 = vmul.f32 %v166, 0.16666667
    %v183 = vld [vmem:[%s1] sm:$0xf]
    %v184 = vld [vmem:[%s1 + $0x4] sm:$0xf]
    %v185 = vld [vmem:[%s1 + $0x8] sm:$0xf]
    %v186 = vld [vmem:[%s1 + $0xc] sm:$0xf]
    %v187 = vld [vmem:[%s2] sm:$0xff]
    %v188 = vpack.c.bf16 %v167, %v167
    %v189 = vpack.c.bf16 %v168, %v168
    %v190 = vpack.c.bf16 %v169, %v169
    %v191 = vpack.c.bf16 %v170, %v170
    %v192 = vpack.c.bf16 %v171, %v171
    %v193 = vpack.c.bf16 %v172, %v172
    %v194 = vpack.c.bf16 %v173, %v173
    %v195 = vpack.c.bf16 %v174, %v174
    %v196 = vpack.c.bf16 %v175, %v175
    %v197 = vpack.c.bf16 %v176, %v176
    %v198 = vpack.c.bf16 %v177, %v177
    %v199 = vpack.c.bf16 %v178, %v178
    %v200 = vpack.c.bf16 %v179, %v179
    %v201 = vpack.c.bf16 %v180, %v180
    %v202 = vpack.c.bf16 %v181, %v181
    %v203 = vpack.c.bf16 %v182, %v182
    %v204 = vlaneseq
    %v205 = vshrl.u32 %v204, 7
    %v206 = vsub.s32 0, %v205
    %v207 = vrot.slane %v187, %v206
    %v224 = vunpack.c.l.b16 %v188
    %v225 = vunpack.c.l.b16 %v189
    %v226 = vunpack.c.l.b16 %v190
    %v227 = vunpack.c.l.b16 %v191
    %v228 = vunpack.c.l.b16 %v192
    %v229 = vunpack.c.l.b16 %v193
    %v230 = vunpack.c.l.b16 %v194
    %v231 = vunpack.c.l.b16 %v195
    %v232 = vunpack.c.l.b16 %v196
    %v233 = vunpack.c.l.b16 %v197
    %v234 = vunpack.c.l.b16 %v198
    %v235 = vunpack.c.l.b16 %v199
    %v236 = vunpack.c.l.b16 %v200
    %v237 = vunpack.c.l.b16 %v201
    %v238 = vunpack.c.l.b16 %v202
    %v239 = vunpack.c.l.b16 %v203
    %vm240 = vcmask 1041409
    %v241 = vsel %vm240, %v225, %v224
    %vm242 = vcmask 1042434
    %v243 = vsel %vm242, %v226, %v241
    %vm244 = vcmask 1043459
    %v245 = vsel %vm244, %v227, %v243
    %vm246 = vcmask 1044484
    %v247 = vsel %vm246, %v228, %v245
    %vm248 = vcmask 1045509
    %v249 = vsel %vm248, %v229, %v247
    %vm250 = vcmask 1046534
    %v251 = vsel %vm250, %v230, %v249
    %vm252 = vcmask 1047559
    %v253 = vsel %vm252, %v231, %v251
    %v254 = vsel %vm240, %v233, %v232
    %v255 = vsel %vm242, %v234, %v254
    %v256 = vsel %vm244, %v235, %v255
    %v257 = vsel %vm246, %v236, %v256
    %v258 = vsel %vm248, %v237, %v257
    %v259 = vsel %vm250, %v238, %v258
    %v260 = vsel %vm252, %v239, %v259
    %v261 = vpack.c.b16 %v260, %v253
    %v266 = vunpack.c.l.b16 %v183
    %v267 = vunpack.c.l.b16 %v184
    %v268 = vunpack.c.l.b16 %v185
    %v269 = vunpack.c.l.b16 %v186
    %v270 = vpack.c.b16 %v267, %v266
    %v271 = vpack.c.b16 %v269, %v268
    %vm274 = vcmask 261120
    %v276 = vsel %vm274, %v261, 0
    %278 = vmatprep.subr.bf16.mxu0 0
    %279 = vmatpush1.bf16.msra.mxu0 %v270
    %280 = vmatprep.subr.bf16.mxu0 0
    %281 = vmatpush1.bf16.msra.mxu0 %v271
    %282 = vmatprep.subr.bf16.mxu0 0
    %283 = vmatpush1.bf16.msra.mxu0 0
    %284 = vmatprep.subr.bf16.mxu0 0
    %285 = vmatpush1.bf16.msra.mxu0 0
    %286 = vmatprep.subr.bf16.mxu0 0
    %287 = vmatpush1.bf16.msra.mxu0 0
    %288 = vmatprep.subr.bf16.mxu0 0
    %289 = vmatpush1.bf16.msra.mxu0 0
    %290 = vmatprep.subr.bf16.mxu0 0
    %291 = vmatpush1.bf16.msra.mxu0 0
    %292 = vmatprep.subr.bf16.mxu0 0
    %293 = vmatpush1.bf16.msra.mxu0 0
    %294 = vmatprep.subr.bf16.mxu0 0
    %295 = vmatpush1.bf16.msra.mxu0 0
    %296 = vmatprep.subr.bf16.mxu0 0
    %297 = vmatpush1.bf16.msra.mxu0 0
    %298 = vmatprep.subr.bf16.mxu0 0
    %299 = vmatpush1.bf16.msra.mxu0 0
    %300 = vmatprep.subr.bf16.mxu0 0
    %301 = vmatpush1.bf16.msra.mxu0 0
    %302 = vmatprep.subr.bf16.mxu0 0
    %303 = vmatpush1.bf16.msra.mxu0 0
    %304 = vmatprep.subr.bf16.mxu0 0
    %305 = vmatpush1.bf16.msra.mxu0 0
    %306 = vmatprep.subr.bf16.mxu0 0
    %307 = vmatpush1.bf16.msra.mxu0 0
    %308 = vmatprep.subr.bf16.mxu0 0
    %309 = vmatpush1.bf16.msra.mxu0 0
    %310 = vmatprep.mubr.bf16.mxu0 0
    %311 = vmatmul.mubr.bf16.gmra.mrb[0].mxu0 %v276
    %v312 = vpop.f32.mrb[0].mxu0
    %v313 = vadd.f32 %v207, %v312
    %v314 = vpop.f32.mrb[0].mxu0
    %v315 = vpop.f32.mrb[0].mxu0
    %v316 = vadd.f32 %v207, %v315
    %v317 = vpop.f32.mrb[0].mxu0
    %318 = vdwg.mxu0
    %v319 = vsel %vm274, %v313, 0.0
    %320 = vadd.xlane.f32.xlu0 %v319
    %v321 = vpop.xlane.xlu0 %320
    %v322 = vsel %vm274, %v316, 0.0
    %323 = vadd.xlane.f32.xlu0 %v322
    %v324 = vpop.xlane.xlu0 %323
    %v325 = vrcp.pop 32.0
    %v326 = vmul.f32 %v321, %v325
    %v327 = vmul.f32 %v324, %v325
    %v328 = vsub.f32 %v313, %v326
    %v329 = vsub.f32 %v316, %v327
    %v330 = vmul.f32 %v328, %v328
    %v331 = vmul.f32 %v329, %v329
    %v332 = vsel %vm274, %v330, 0.0
    %333 = vadd.xlane.f32.xlu0 %v332
    %v334 = vpop.xlane.xlu0 %333
    %v335 = vsel %vm274, %v331, 0.0
    %336 = vadd.xlane.f32.xlu0 %v335
    %v337 = vpop.xlane.xlu0 %336
    %v338 = vmul.f32 %v334, %v325
    %v339 = vmul.f32 %v337, %v325
    %v340 = vadd.f32 %v338, 1e-05
    %v341 = vadd.f32 %v339, 1e-05
    %v342 = vrsqrt.pop %v340
    %v343 = vrsqrt.pop %v341
    %v344 = vmul.f32 %v328, %v342
    %v345 = vmul.f32 %v329, %v343
    %v346 = vlaneseq
    %v347 = vshrl.u32 %v346, 7
    %v348 = vsub.s32 1, %v347
    %v349 = vrot.slane %v187, %v348
    %v350 = vmul.f32 %v344, %v349
    %v351 = vmul.f32 %v345, %v349
    %v352 = vlaneseq
    %v353 = vshrl.u32 %v352, 7
    %v354 = vsub.s32 2, %v353
    %v355 = vrot.slane %v187, %v354
    %v356 = vadd.f32 %v350, %v355
    %v357 = vadd.f32 %v351, %v355
    %v358 = vmax.f32 %v356, 0.0
    %v359 = vmax.f32 %v357, 0.0
    %s360 = scalar_lea.vmem %s1, 16
    %v361 = vld [vmem:[%s360] sm:$0xf]
    %v362 = vld [vmem:[%s360 + $0x4] sm:$0xf]
    %v363 = vld [vmem:[%s360 + $0x8] sm:$0xf]
    %v364 = vld [vmem:[%s360 + $0xc] sm:$0xf]
    %s365 = scalar_lea.vmem %s2, 8
    %v366 = vld [vmem:[%s365] sm:$0xff]
    %v367 = vpack.c.bf16 %v359, %v358
    %v368 = vlaneseq
    %v369 = vshrl.u32 %v368, 7
    %v370 = vsub.s32 0, %v369
    %v371 = vrot.slane %v366, %v370
    %v376 = vunpack.c.l.b16 %v361
    %v377 = vunpack.c.l.b16 %v362
    %v378 = vunpack.c.l.b16 %v363
    %v379 = vunpack.c.l.b16 %v364
    %v380 = vpack.c.b16 %v377, %v376
    %v381 = vpack.c.b16 %v379, %v378
    %v385 = vsel %vm274, %v367, 0
    %387 = vmatprep.subr.bf16.mxu0 0
    %388 = vmatpush1.bf16.msra.mxu0 %v380
    %389 = vmatprep.subr.bf16.mxu0 0
    %390 = vmatpush1.bf16.msra.mxu0 %v381
    %391 = vmatprep.subr.bf16.mxu0 0
    %392 = vmatpush1.bf16.msra.mxu0 0
    %393 = vmatprep.subr.bf16.mxu0 0
    %394 = vmatpush1.bf16.msra.mxu0 0
    %395 = vmatprep.subr.bf16.mxu0 0
    %396 = vmatpush1.bf16.msra.mxu0 0
    %397 = vmatprep.subr.bf16.mxu0 0
    %398 = vmatpush1.bf16.msra.mxu0 0
    %399 = vmatprep.subr.bf16.mxu0 0
    %400 = vmatpush1.bf16.msra.mxu0 0
    %401 = vmatprep.subr.bf16.mxu0 0
    %402 = vmatpush1.bf16.msra.mxu0 0
    %403 = vmatprep.subr.bf16.mxu0 0
    %404 = vmatpush1.bf16.msra.mxu0 0
    %405 = vmatprep.subr.bf16.mxu0 0
    %406 = vmatpush1.bf16.msra.mxu0 0
    %407 = vmatprep.subr.bf16.mxu0 0
    %408 = vmatpush1.bf16.msra.mxu0 0
    %409 = vmatprep.subr.bf16.mxu0 0
    %410 = vmatpush1.bf16.msra.mxu0 0
    %411 = vmatprep.subr.bf16.mxu0 0
    %412 = vmatpush1.bf16.msra.mxu0 0
    %413 = vmatprep.subr.bf16.mxu0 0
    %414 = vmatpush1.bf16.msra.mxu0 0
    %415 = vmatprep.subr.bf16.mxu0 0
    %416 = vmatpush1.bf16.msra.mxu0 0
    %417 = vmatprep.subr.bf16.mxu0 0
    %418 = vmatpush1.bf16.msra.mxu0 0
    %419 = vmatprep.mubr.bf16.mxu0 0
    %420 = vmatmul.mubr.bf16.gmra.mrb[0].mxu0 %v385
    %v421 = vpop.f32.mrb[0].mxu0
    %v422 = vadd.f32 %v371, %v421
    %v423 = vpop.f32.mrb[0].mxu0
    %v424 = vpop.f32.mrb[0].mxu0
    %v425 = vadd.f32 %v371, %v424
    %v426 = vpop.f32.mrb[0].mxu0
    %427 = vdwg.mxu0
    %v428 = vsel %vm274, %v422, 0.0
    %429 = vadd.xlane.f32.xlu0 %v428
    %v430 = vpop.xlane.xlu0 %429
    %v431 = vsel %vm274, %v425, 0.0
    %432 = vadd.xlane.f32.xlu0 %v431
    %v433 = vpop.xlane.xlu0 %432
    %v434 = vmul.f32 %v430, %v325
    %v435 = vmul.f32 %v433, %v325
    %v436 = vsub.f32 %v422, %v434
    %v437 = vsub.f32 %v425, %v435
    %v438 = vmul.f32 %v436, %v436
    %v439 = vmul.f32 %v437, %v437
    %v440 = vsel %vm274, %v438, 0.0
    %441 = vadd.xlane.f32.xlu0 %v440
    %v442 = vpop.xlane.xlu0 %441
    %v443 = vsel %vm274, %v439, 0.0
    %444 = vadd.xlane.f32.xlu0 %v443
    %v445 = vpop.xlane.xlu0 %444
    %v446 = vmul.f32 %v442, %v325
    %v447 = vmul.f32 %v445, %v325
    %v448 = vadd.f32 %v446, 1e-05
    %v449 = vadd.f32 %v447, 1e-05
    %v450 = vrsqrt.pop %v448
    %v451 = vrsqrt.pop %v449
    %v452 = vmul.f32 %v436, %v450
    %v453 = vmul.f32 %v437, %v451
    %v454 = vlaneseq
    %v455 = vshrl.u32 %v454, 7
    %v456 = vsub.s32 1, %v455
    %v457 = vrot.slane %v366, %v456
    %v458 = vmul.f32 %v452, %v457
    %v459 = vmul.f32 %v453, %v457
    %v460 = vlaneseq
    %v461 = vshrl.u32 %v460, 7
    %v462 = vsub.s32 2, %v461
    %v463 = vrot.slane %v366, %v462
    %v464 = vadd.f32 %v458, %v463
    %v465 = vadd.f32 %v459, %v463
    %v466 = vmax.f32 %v464, 0.0
    %v467 = vmax.f32 %v465, 0.0
    %v468 = vpack.c.bf16 %v467, %v466
    %v469 = vld [vmem:[%s3] sm:$0xf]
    %v470 = vld [vmem:[%s3 + $0x4] sm:$0xf]
    %v471 = vld [vmem:[%s3 + $0x8] sm:$0xf]
    %v472 = vld [vmem:[%s3 + $0xc] sm:$0xf]
    %v473 = vld [vmem:[%s4] sm:$0x1]
    %v474 = vlaneseq
    %v475 = vshrl.u32 %v474, 7
    %v476 = vsub.s32 0, %v475
    %v477 = vrot.slane %v473, %v476
    %v482 = vunpack.c.l.b16 %v469
    %v483 = vunpack.c.l.b16 %v470
    %v484 = vunpack.c.l.b16 %v471
    %v485 = vunpack.c.l.b16 %v472
    %v486 = vpack.c.b16 %v483, %v482
    %v487 = vpack.c.b16 %v485, %v484
    %v491 = vsel %vm274, %v468, 0
    %493 = vmatprep.subr.bf16.mxu0 0
    %494 = vmatpush1.bf16.msra.mxu0 %v486
    %495 = vmatprep.subr.bf16.mxu0 0
    %496 = vmatpush1.bf16.msra.mxu0 %v487
    %497 = vmatprep.subr.bf16.mxu0 0
    %498 = vmatpush1.bf16.msra.mxu0 0
    %499 = vmatprep.subr.bf16.mxu0 0
    %500 = vmatpush1.bf16.msra.mxu0 0
    %501 = vmatprep.subr.bf16.mxu0 0
    %502 = vmatpush1.bf16.msra.mxu0 0
    %503 = vmatprep.subr.bf16.mxu0 0
    %504 = vmatpush1.bf16.msra.mxu0 0
    %505 = vmatprep.subr.bf16.mxu0 0
    %506 = vmatpush1.bf16.msra.mxu0 0
    %507 = vmatprep.subr.bf16.mxu0 0
    %508 = vmatpush1.bf16.msra.mxu0 0
    %509 = vmatprep.subr.bf16.mxu0 0
    %510 = vmatpush1.bf16.msra.mxu0 0
    %511 = vmatprep.subr.bf16.mxu0 0
    %512 = vmatpush1.bf16.msra.mxu0 0
    %513 = vmatprep.subr.bf16.mxu0 0
    %514 = vmatpush1.bf16.msra.mxu0 0
    %515 = vmatprep.subr.bf16.mxu0 0
    %516 = vmatpush1.bf16.msra.mxu0 0
    %517 = vmatprep.subr.bf16.mxu0 0
    %518 = vmatpush1.bf16.msra.mxu0 0
    %519 = vmatprep.subr.bf16.mxu0 0
    %520 = vmatpush1.bf16.msra.mxu0 0
    %521 = vmatprep.subr.bf16.mxu0 0
    %522 = vmatpush1.bf16.msra.mxu0 0
    %523 = vmatprep.subr.bf16.mxu0 0
    %524 = vmatpush1.bf16.msra.mxu0 0
    %525 = vmatprep.mubr.bf16.mxu0 0
    %526 = vmatmul.mubr.bf16.gmra.mrb[0].mxu0 %v491
    %v527 = vpop.f32.mrb[0].mxu0
    %v528 = vadd.f32 %v477, %v527
    %v529 = vpop.f32.mrb[0].mxu0
    %v530 = vpop.f32.mrb[0].mxu0
    %v531 = vadd.f32 %v477, %v530
    %v532 = vpop.f32.mrb[0].mxu0
    %533 = vdwg.mxu0
    %534 = vst [vmem:[#allocation2] sm:$0xff] %v528
    %535 = vst [vmem:[#allocation2 + $0x8] sm:$0xff] %v531
    // Predicated region
    $region22: #{tpu_custom_call.1} parent=1 // pred_check
      _
    $region23: #{tpu_custom_call.1} parent=1 // pred_check_branch
      %537 = sbr.rel (0) target = $region25
    $region24: #{tpu_custom_call.1} parent=1 // pred_region
      %s539 = ssub.s32 256, 256
      %540 = vsyncadd [#allocation3], %s539
      %s541 = sshll.u32 [#allocation2], 4
      %s542 = int_to_ptr.vmem [resolvable:$true] %s541
      %547 = dma.vmem_to_hbm [thread:$0]  %s542, 256, %s5, [#allocation3], 128, 128, 8
    $region25: #{tpu_custom_call.1} parent=1 // pred_fallthru
      _
    // Predicated region
    $region26: #{tpu_custom_call.1} parent=1 // pred_check
      _
    $region27: #{tpu_custom_call.1} parent=1 // pred_check_branch
      %549 = sbr.rel (0) target = $region29
    $region28: #{tpu_custom_call.1} parent=1 // pred_region
      %550 = dma.done [#allocation3], 256
    $region29: #{tpu_custom_call.1} parent=1 // pred_fallthru
      _
    %551 = vsyncpa [#allocation3], 1

</llo_original>
